<compile_context>
chip_gen: v7x
topology: tpu7x:2x2x1
jax: 0.10.0
libtpu: 0.0.40
codegen_flags: <defaults>
</compile_context>

<pallas_src>
import jax
import jax.numpy as jnp
from jax.experimental import pallas as pl
from jax.experimental.pallas import tpu as pltpu

LANE = 128          # lane width / padded feature width
NUM_LAYERS = 4      # trunk(2) + fused stream hidden + fused (dueling-folded) heads


def _round_up(x, m):
    return ((x + m - 1) // m) * m


def dueling_dqn_kernel(x_ref, w_ref, b_ref, out_ref):
    """x_ref: [bm, Kp] f32, w_ref: [4,128,128] bf16, b_ref: [4,1,128] f32."""
    kp = x_ref.shape[1]

    # Layer 0: feature Linear1 (+ bias operand) -> ReLU.
    h = jnp.dot(x_ref[...].astype(jnp.bfloat16), w_ref[0, :kp, :],
                preferred_element_type=jnp.float32)
    h = jnp.maximum(h + b_ref[0], 0.0)

    # Layer 1: feature Linear2 (BN1 folded)   -> ReLU.
    # Layer 2: fused [value|adv] hidden (BN2 folded) -> ReLU.
    for l in (1, 2):
        h = jnp.dot(h.astype(jnp.bfloat16), w_ref[l],
                    preferred_element_type=jnp.float32)
        h = jnp.maximum(h + b_ref[l], 0.0)

    # Layer 3: block-diagonal heads with the dueling combine folded into the
    # weights -> columns 0..action_dim-1 are Q(s, a) directly (no epilogue).
    q = jnp.dot(h.astype(jnp.bfloat16), w_ref[3],
                preferred_element_type=jnp.float32)
    out_ref[...] = q + b_ref[3]


def _choose_block(B, block_m):
    B8 = max(8, _round_up(B, 8))
    bm = min(block_m, B8)
    # v7x megacore: prefer >=2 grid steps so both TensorCores get work.
    # Harmless on single-TC v5e/v6e (one extra ~0.35us step).
    if B8 >= 16 and B8 // bm < 2:
        bm = _round_up((B8 + 1) // 2, 8)
    Bp = _round_up(B8, bm)
    return bm, Bp


def _dueling_dqn_forward(x, packed_w, packed_b, *, action_dim, block_m=1024):
    """x: [B, state_dim] f32. packed_w/packed_b from pack_params."""
    B, state_dim = x.shape
    Kp = _round_up(state_dim, 8)           # small sublane-aligned pad, not 128
    bm, Bp = _choose_block(B, block_m)

    # Pad batch rows to the block grid and features to a multiple of 8 lanes.
    x_pad = jnp.pad(x, ((0, Bp - B), (0, Kp - state_dim)))

    out = pl.pallas_call(
        dueling_dqn_kernel,
        out_shape=jax.ShapeDtypeStruct((Bp, LANE), jnp.float32),
        grid=(Bp // bm,),
        in_specs=[
            pl.BlockSpec((bm, Kp), lambda i: (i, 0)),                 # x tile
            pl.BlockSpec((NUM_LAYERS, LANE, LANE), lambda i: (0, 0, 0)),  # weights (resident)
            pl.BlockSpec((NUM_LAYERS, 1, LANE), lambda i: (0, 0, 0)),     # biases (resident)
        ],
        out_specs=pl.BlockSpec((bm, LANE), lambda i: (i, 0)),
        compiler_params=pltpu.CompilerParams(
            dimension_semantics=("parallel",)),   # megacore split on v7x
    )(x_pad, packed_w, packed_b)

    return out[:B, :action_dim]


# jit the whole wrapper (pad + pallas_call + slice): for tiny batches the
# un-jitted host ops / dispatch dominate wall time, not the kernel.
dueling_dqn_forward = jax.jit(_dueling_dqn_forward,
                              static_argnames=("action_dim", "block_m"))


def pack_params(params, state_dim, hidden_dims, action_dim):
    """Host-side constant folding + packing.

    Returns:
      packed_w: [4, 128, 128] bf16 weight slabs
      packed_b: [4, 1, 128]   f32 bias rows
    """
    h0, h1, h2 = hidden_dims
    assert max(state_dim, h0, h1, 2 * h2, action_dim) <= LANE, \
        "layer exceeds single-slab packing"

    # --- fold eval-mode BatchNorm (applied after ReLU) into the next Linear ---
    # (relu * s + t) @ W + b  ==  relu @ (s^T * W) + (t @ W + b)
    w2f = params["s1"].T * params["w2"]
    b2f = params["b2"] + params["t1"] @ params["w2"]

    wv1f = params["s2"].T * params["wv1"]
    bv1f = params["bv1"] + params["t2"] @ params["wv1"]
    wa1f = params["s2"].T * params["wa1"]
    ba1f = params["ba1"] + params["t2"] @ params["wa1"]

    # --- fuse value / advantage streams ---
    wcat1 = jnp.concatenate([wv1f, wa1f], axis=1)          # [h1, 2*h2]
    bcat1 = jnp.concatenate([bv1f, ba1f], axis=1)          # [1, 2*h2]

    wcat2 = jnp.zeros((2 * h2, 1 + action_dim), jnp.float32)
    wcat2 = wcat2.at[:h2, 0:1].set(params["wv2"])
    wcat2 = wcat2.at[h2:, 1:].set(params["wa2"])
    bcat2 = jnp.concatenate([params["bv2"], params["ba2"]], axis=1)

    # --- fold the dueling combine q_a = V + A_a - mean_j(A_j) into the heads ---
    #   M[0, a] = 1 ;  M[1+j, a] = delta_ja - 1/action_dim
    M = jnp.concatenate(
        [jnp.ones((1, action_dim), jnp.float32),
         jnp.eye(action_dim, dtype=jnp.float32) - 1.0 / action_dim], axis=0)
    wq = wcat2 @ M                                          # [2*h2, action_dim]
    bq = bcat2 @ M                                          # [1, action_dim]

    layers = [
        (params["w1"], params["b1"]),  # feature Linear1
        (w2f, b2f),                    # feature Linear2 (+BN1 fold)
        (wcat1, bcat1),                # fused stream hidden (+BN2 fold)
        (wq, bq),                      # fused heads (+dueling fold) -> Q
    ]

    packed_w = jnp.zeros((NUM_LAYERS, LANE, LANE), jnp.bfloat16)
    packed_b = jnp.zeros((NUM_LAYERS, 1, LANE), jnp.float32)
    for l, (w, b) in enumerate(layers):
        k, n = w.shape
        packed_w = packed_w.at[l, :k, :n].set(w.astype(jnp.bfloat16))
        packed_b = packed_b.at[l, 0, :n].set(b[0])
    return packed_w, packed_b


def init_params(key, state_dim, hidden_dims, action_dim):
    """Init mimicking nn.Linear / NoisyLinear(mu) defaults, plus non-trivial
    BatchNorm running stats so the host-side BN folding is actually exercised."""
    h0, h1, h2 = hidden_dims
    keys = jax.random.split(key, 20)

    def linear(kw, kb, fan_in, fan_out):
        bound = 1.0 / jnp.sqrt(jnp.float32(fan_in))
        w = jax.random.uniform(kw, (fan_in, fan_out), jnp.float32, -bound, bound)
        b = jax.random.uniform(kb, (1, fan_out), jnp.float32, -bound, bound)
        return w, b

    w1, b1 = linear(keys[0], keys[1], state_dim, h0)
    w2, b2 = linear(keys[2], keys[3], h0, h1)
    wv1, bv1 = linear(keys[4], keys[5], h1, h2)
    wv2, bv2 = linear(keys[6], keys[7], h2, 1)
    wa1, ba1 = linear(keys[8], keys[9], h1, h2)
    wa2, ba2 = linear(keys[10], keys[11], h2, action_dim)

    eps = 1e-5

    def bn_fold(kg, kb, km, kv, dim):
        gamma = jax.random.uniform(kg, (1, dim), jnp.float32, 0.5, 1.5)
        beta = 0.1 * jax.random.normal(kb, (1, dim), jnp.float32)
        rmean = 0.5 * jax.random.normal(km, (1, dim), jnp.float32)
        rvar = jax.random.uniform(kv, (1, dim), jnp.float32, 0.5, 1.5)
        scale = gamma / jnp.sqrt(rvar + eps)
        shift = beta - rmean * scale
        return scale, shift

    s1, t1 = bn_fold(keys[12], keys[13], keys[14], keys[15], h0)
    s2, t2 = bn_fold(keys[16], keys[17], keys[18], keys[19], h1)

    return dict(
        w1=w1, b1=b1, s1=s1, t1=t1,
        w2=w2, b2=b2, s2=s2, t2=t2,
        wv1=wv1, bv1=bv1, wv2=wv2, bv2=bv2,
        wa1=wa1, ba1=ba1, wa2=wa2, ba2=ba2,
    )


def reference_forward(x, p):
    """Pure-JAX f32 reference of the unfused eval-mode forward (sanity check)."""
    h = jnp.maximum(x @ p["w1"] + p["b1"], 0.0) * p["s1"] + p["t1"]
    h = jnp.maximum(h @ p["w2"] + p["b2"], 0.0) * p["s2"] + p["t2"]
    v = jnp.maximum(h @ p["wv1"] + p["bv1"], 0.0) @ p["wv2"] + p["bv2"]
    a = jnp.maximum(h @ p["wa1"] + p["ba1"], 0.0) @ p["wa2"] + p["ba2"]
    return v + (a - jnp.mean(a, axis=1, keepdims=True))


if __name__ == "__main__":
    # Small shapes consistent with the module: state_dim=16, hidden=[32,32,32], actions=4
    state_dim, hidden_dims, action_dim, batch = 16, [32, 32, 32], 4, 8

    key = jax.random.PRNGKey(0)
    k_params, k_state, k_state2 = jax.random.split(key, 3)
    params = init_params(k_params, state_dim, hidden_dims, action_dim)
    packed_w, packed_b = pack_params(params, state_dim, hidden_dims, action_dim)

    # Tiny latency-style batch (single grid step).
    state = jax.random.normal(k_state, (batch, state_dim), jnp.float32)
    q = dueling_dqn_forward(state, packed_w, packed_b, action_dim=action_dim)
    q = jax.block_until_ready(q)
    q_ref = reference_forward(state, params)
    assert q.shape == (batch, action_dim)
    err = float(jnp.max(jnp.abs(q - q_ref)))
    # bf16 MXU operands -> tolerance looser than the f32 reference.
    assert jnp.allclose(q, q_ref, atol=5e-2, rtol=5e-2), err

    # Larger batch exercising batch-row padding and the >=2-step grid path.
    state2 = jax.random.normal(k_state2, (50, state_dim), jnp.float32)
    q2 = dueling_dqn_forward(state2, packed_w, packed_b, action_dim=action_dim)
    q2 = jax.block_until_ready(q2)
    q2_ref = reference_forward(state2, params)
    assert q2.shape == (50, action_dim)
    err2 = float(jnp.max(jnp.abs(q2 - q2_ref)))
    assert jnp.allclose(q2, q2_ref, atol=5e-2, rtol=5e-2), err2

    print("KERNEL_OK")
</pallas_src>

<mosaic_0001>
module attributes {stable_mosaic.version = 11 : i64} {
  func.func @dueling_dqn_kernel(%arg0: i32, %arg1: memref<8x16xf32, #tpu.memory_space<vmem>>, %arg2: memref<4x128x128xbf16, #tpu.memory_space<vmem>>, %arg3: memref<4x1x128xf32, #tpu.memory_space<vmem>>, %arg4: memref<8x128xf32, #tpu.memory_space<vmem>>) attributes {dimension_semantics = [#tpu.dimension_semantics<parallel>], iteration_bounds = array<i64: 1>, scalar_prefetch = 0 : i64, scratch_operands = 0 : i64, tpu.core_type = #tpu.core_type<tc>, window_params = [{transform_indices = @transform_0, window_bounds = array<i64: 8, 16>}, {pipeline_mode = #tpu.pipeline_mode<synchronous>, transform_indices = @transform_1, window_bounds = array<i64: 4, 128, 128>}, {pipeline_mode = #tpu.pipeline_mode<synchronous>, transform_indices = @transform_2, window_bounds = array<i64: 4, 1, 128>}, {transform_indices = @transform_3, window_bounds = array<i64: 8, 128>}]} {
    %c0 = arith.constant 0 : index
    %c0_0 = arith.constant 0 : index
    %0 = vector.load %arg1[%c0, %c0_0] : memref<8x16xf32, #tpu.memory_space<vmem>>, vector<8x16xf32>
    %1 = arith.truncf %0 : vector<8x16xf32> to vector<8x16xbf16>
    %c0_1 = arith.constant 0 : index
    %c0_2 = arith.constant 0 : index
    %c0_3 = arith.constant 0 : index
    %2 = vector.load %arg2[%c0_1, %c0_2, %c0_3] : memref<4x128x128xbf16, #tpu.memory_space<vmem>>, vector<1x16x128xbf16>
    %3 = vector.shape_cast %2 : vector<1x16x128xbf16> to vector<16x128xbf16>
    %cst = arith.constant dense<0.000000e+00> : vector<8x128xf32>
    %4 = tpu.matmul %1, %3, %cst {dimension_numbers = #tpu.dot_dimension_numbers<[1], [0], [0], [1], [0, 0, 1, 1], [], []>} : vector<8x16xbf16>, vector<16x128xbf16>, vector<8x128xf32> -> vector<8x128xf32>
    %c0_4 = arith.constant 0 : index
    %c0_5 = arith.constant 0 : index
    %c0_6 = arith.constant 0 : index
    %5 = vector.load %arg3[%c0_4, %c0_5, %c0_6] : memref<4x1x128xf32, #tpu.memory_space<vmem>>, vector<1x1x128xf32>
    %6 = vector.shape_cast %5 : vector<1x1x128xf32> to vector<1x128xf32>
    %7 = vector.broadcast %6 : vector<1x128xf32> to vector<8x128xf32>
    %8 = arith.addf %4, %7 : vector<8x128xf32>
    %cst_7 = arith.constant 0.000000e+00 : f32
    %9 = vector.broadcast %cst_7 : f32 to vector<8x128xf32>
    %10 = arith.maximumf %8, %9 : vector<8x128xf32>
    %11 = arith.truncf %10 : vector<8x128xf32> to vector<8x128xbf16>
    %c1 = arith.constant 1 : index
    %c0_8 = arith.constant 0 : index
    %c0_9 = arith.constant 0 : index
    %12 = vector.load %arg2[%c1, %c0_8, %c0_9] : memref<4x128x128xbf16, #tpu.memory_space<vmem>>, vector<1x128x128xbf16>
    %13 = vector.shape_cast %12 : vector<1x128x128xbf16> to vector<128x128xbf16>
    %cst_10 = arith.constant dense<0.000000e+00> : vector<8x128xf32>
    %14 = tpu.matmul %11, %13, %cst_10 {dimension_numbers = #tpu.dot_dimension_numbers<[1], [0], [0], [1], [0, 0, 1, 1], [], []>} : vector<8x128xbf16>, vector<128x128xbf16>, vector<8x128xf32> -> vector<8x128xf32>
    %c1_11 = arith.constant 1 : index
    %c0_12 = arith.constant 0 : index
    %c0_13 = arith.constant 0 : index
    %15 = vector.load %arg3[%c1_11, %c0_12, %c0_13] : memref<4x1x128xf32, #tpu.memory_space<vmem>>, vector<1x1x128xf32>
    %16 = vector.shape_cast %15 : vector<1x1x128xf32> to vector<1x128xf32>
    %17 = vector.broadcast %16 : vector<1x128xf32> to vector<8x128xf32>
    %18 = arith.addf %14, %17 : vector<8x128xf32>
    %cst_14 = arith.constant 0.000000e+00 : f32
    %19 = vector.broadcast %cst_14 : f32 to vector<8x128xf32>
    %20 = arith.maximumf %18, %19 : vector<8x128xf32>
    %21 = arith.truncf %20 : vector<8x128xf32> to vector<8x128xbf16>
    %c2 = arith.constant 2 : index
    %c0_15 = arith.constant 0 : index
    %c0_16 = arith.constant 0 : index
    %22 = vector.load %arg2[%c2, %c0_15, %c0_16] : memref<4x128x128xbf16, #tpu.memory_space<vmem>>, vector<1x128x128xbf16>
    %23 = vector.shape_cast %22 : vector<1x128x128xbf16> to vector<128x128xbf16>
    %cst_17 = arith.constant dense<0.000000e+00> : vector<8x128xf32>
    %24 = tpu.matmul %21, %23, %cst_17 {dimension_numbers = #tpu.dot_dimension_numbers<[1], [0], [0], [1], [0, 0, 1, 1], [], []>} : vector<8x128xbf16>, vector<128x128xbf16>, vector<8x128xf32> -> vector<8x128xf32>
    %c2_18 = arith.constant 2 : index
    %c0_19 = arith.constant 0 : index
    %c0_20 = arith.constant 0 : index
    %25 = vector.load %arg3[%c2_18, %c0_19, %c0_20] : memref<4x1x128xf32, #tpu.memory_space<vmem>>, vector<1x1x128xf32>
    %26 = vector.shape_cast %25 : vector<1x1x128xf32> to vector<1x128xf32>
    %27 = vector.broadcast %26 : vector<1x128xf32> to vector<8x128xf32>
    %28 = arith.addf %24, %27 : vector<8x128xf32>
    %cst_21 = arith.constant 0.000000e+00 : f32
    %29 = vector.broadcast %cst_21 : f32 to vector<8x128xf32>
    %30 = arith.maximumf %28, %29 : vector<8x128xf32>
    %31 = arith.truncf %30 : vector<8x128xf32> to vector<8x128xbf16>
    %c3 = arith.constant 3 : index
    %c0_22 = arith.constant 0 : index
    %c0_23 = arith.constant 0 : index
    %32 = vector.load %arg2[%c3, %c0_22, %c0_23] : memref<4x128x128xbf16, #tpu.memory_space<vmem>>, vector<1x128x128xbf16>
    %33 = vector.shape_cast %32 : vector<1x128x128xbf16> to vector<128x128xbf16>
    %cst_24 = arith.constant dense<0.000000e+00> : vector<8x128xf32>
    %34 = tpu.matmul %31, %33, %cst_24 {dimension_numbers = #tpu.dot_dimension_numbers<[1], [0], [0], [1], [0, 0, 1, 1], [], []>} : vector<8x128xbf16>, vector<128x128xbf16>, vector<8x128xf32> -> vector<8x128xf32>
    %c3_25 = arith.constant 3 : index
    %c0_26 = arith.constant 0 : index
    %c0_27 = arith.constant 0 : index
    %35 = vector.load %arg3[%c3_25, %c0_26, %c0_27] : memref<4x1x128xf32, #tpu.memory_space<vmem>>, vector<1x1x128xf32>
    %36 = vector.shape_cast %35 : vector<1x1x128xf32> to vector<1x128xf32>
    %37 = vector.broadcast %36 : vector<1x128xf32> to vector<8x128xf32>
    %38 = arith.addf %34, %37 : vector<8x128xf32>
    %c0_28 = arith.constant 0 : index
    %c0_29 = arith.constant 0 : index
    %39 = vector.load %arg4[%c0_28, %c0_29] : memref<8x128xf32, #tpu.memory_space<vmem>>, vector<8x128xf32>
    tpu.vector_store %arg4[%c0_28, %c0_29], %38 {strides = array<i32>} : memref<8x128xf32, #tpu.memory_space<vmem>>, vector<8x128xf32>,
    return
  }
  func.func @transform_0(%arg0: i32) -> (i32, i32) {
    %c0_i32 = arith.constant 0 : i32
    %c0_i32_0 = arith.constant 0 : i32
    return %arg0, %c0_i32 : i32, i32
  }
  func.func @transform_1(%arg0: i32) -> (i32, i32, i32) {
    %c0_i32 = arith.constant 0 : i32
    %c0_i32_0 = arith.constant 0 : i32
    %c0_i32_1 = arith.constant 0 : i32
    %c0_i32_2 = arith.constant 0 : i32
    return %c0_i32, %c0_i32_0, %c0_i32_1 : i32, i32, i32
  }
  func.func @transform_2(%arg0: i32) -> (i32, i32, i32) {
    %c0_i32 = arith.constant 0 : i32
    %c0_i32_0 = arith.constant 0 : i32
    %c0_i32_1 = arith.constant 0 : i32
    %c0_i32_2 = arith.constant 0 : i32
    return %c0_i32, %c0_i32_0, %c0_i32_1 : i32, i32, i32
  }
  func.func @transform_3(%arg0: i32) -> (i32, i32) {
    %c0_i32 = arith.constant 0 : i32
    %c0_i32_0 = arith.constant 0 : i32
    return %arg0, %c0_i32 : i32, i32
  }
}

</mosaic_0001>

<llo_original>
// kernel: _dueling_dqn_forward.1
$region0: #{_dueling_dqn_forward.1}
  #allocation0 [shape = 'u32[]', space=smem, size = 0x4, offset = 0x4, fixed_abs, tag = 'smem constant byte address 0x4 - core index']
  #allocation1 [shape = 'u32[144,128]{1,0:T(1,128)}', space=vmem, size = 0x12000, scoped, tag = 'internal scratch']
  %s0 = inlined_call_operand.hbm [shape: f32[8,16], index: 0, kind: input, shape index: {}]
  %s1 = inlined_call_operand.hbm [shape: bf16[4,128,128], index: 1, kind: input, shape index: {}]
  %s2 = inlined_call_operand.vmem [shape: f32[4,1,128], index: 2, kind: input, shape index: {}]
  %s3 = inlined_call_operand.vmem [shape: f32[8,128], index: 3, kind: output, shape index: {}]
  %s4 = sld [smem:[#allocation0]]
  $region30: #{_dueling_dqn_forward.1} parent=0
    _
  %s6 = ssub.s32 1, %s4
  %s7 = scalar_select 0, %s6, %s4
  $region1: #{_dueling_dqn_forward.1} parent=0
    #allocation2 [shape = 'u8[4096]{0}', space=vmem, size = 0x1000, scoped, tag = 'input window, operand 0, single buffered']
    #allocation3 [shape = 's32[1]{0}', space=sflag, size = 0x4, scoped, tag = 'scoped memory for _dueling_dqn_forward.1']
    #allocation4 [shape = 'u8[131072]{0}', space=vmem, size = 0x20000, scoped, tag = 'input window, operand 1, single buffered']
    #allocation5 [shape = 's32[1]{0}', space=sflag, size = 0x4, scoped, tag = 'scoped memory for _dueling_dqn_forward.1']
    %8 = vsyncpa [#allocation3], 0
    %9 = vsyncpa [#allocation5], 0
    // Predicated region
    $region2: #{_dueling_dqn_forward.1} parent=1 // pred_check
      _
    $region3: #{_dueling_dqn_forward.1} parent=1 // pred_check_branch
      %11 = sbr.rel (0) target = $region5
    $region4: #{_dueling_dqn_forward.1} parent=1 // pred_region
      %s13 = ssub.s32 128, 128
      %14 = vsyncadd [#allocation3], %s13
      %s16 = sshll.u32 [#allocation2], 4
      %s17 = int_to_ptr.vmem [resolvable:$true] %s16
      %19 = dma.hbm_to_vmem [thread:$0]  %s0, 128, %s17, [#allocation3]
    $region5: #{_dueling_dqn_forward.1} parent=1 // pred_fallthru
      _
    // Predicated region
    $region6: #{_dueling_dqn_forward.1} parent=1 // pred_check
      _
    $region7: #{_dueling_dqn_forward.1} parent=1 // pred_check_branch
      %21 = sbr.rel (0) target = $region9
    $region8: #{_dueling_dqn_forward.1} parent=1 // pred_region
      %s23 = ssub.s32 4096, 4096
      %24 = vsyncadd [#allocation5], %s23
      %s25 = sshll.u32 [#allocation4], 4
      %s26 = int_to_ptr.vmem [resolvable:$true] %s25
      %31 = dma.hbm_to_vmem [thread:$0]  %s1, 4096, %s26, [#allocation5], 64, 64, 4
    $region9: #{_dueling_dqn_forward.1} parent=1 // pred_fallthru
      _
    // Predicated region
    $region10: #{_dueling_dqn_forward.1} parent=1 // pred_check
      _
    $region11: #{_dueling_dqn_forward.1} parent=1 // pred_check_branch
      %33 = sbr.rel (0) target = $region13
    $region12: #{_dueling_dqn_forward.1} parent=1 // pred_region
      _
    $region13: #{_dueling_dqn_forward.1} parent=1 // pred_fallthru
      _
    // Predicated region
    $region14: #{_dueling_dqn_forward.1} parent=1 // pred_check
      _
    $region15: #{_dueling_dqn_forward.1} parent=1 // pred_check_branch
      %35 = sbr.rel (0) target = $region17
    $region16: #{_dueling_dqn_forward.1} parent=1 // pred_region
      %36 = dma.done [#allocation3], 128
    $region17: #{_dueling_dqn_forward.1} parent=1 // pred_fallthru
      _
    // Predicated region
    $region18: #{_dueling_dqn_forward.1} parent=1 // pred_check
      _
    $region19: #{_dueling_dqn_forward.1} parent=1 // pred_check_branch
      %38 = sbr.rel (0) target = $region21
    $region20: #{_dueling_dqn_forward.1} parent=1 // pred_region
      %39 = dma.done [#allocation5], 4096
    $region21: #{_dueling_dqn_forward.1} parent=1 // pred_fallthru
      _
    %v41 = vld [vmem:[#allocation2] sm:$0xff]
    %v42 = vpack.c.bf16 %v41, %v41
    %v43 = vld [vmem:[#allocation4] sm:$0xf]
    %v44 = vld [vmem:[#allocation4 + $0x4] sm:$0xf]
    %v45 = vld [vmem:[%s2] sm:$0x1]
    %v47 = vlaneseq
    %v48 = vshrl.u32 %v47, 7
    %v49 = vsub.s32 0, %v48
    %v50 = vrot.slane %v45, %v49
    %v54 = vunpack.c.l.b16 %v43
    %v55 = vunpack.c.l.b16 %v44
    %v56 = vpack.c.b16 %v55, %v54
    %vm58 = vcmask 130048
    %v60 = vsel %vm58, %v42, 0
    %62 = vmatprep.subr.bf16.mxu0 0
    %63 = vmatpush1.bf16.msra.mxu0 %v56
    %64 = vmatprep.subr.bf16.mxu0 0
    %65 = vmatpush1.bf16.msra.mxu0 0
    %66 = vmatprep.subr.bf16.mxu0 0
    %67 = vmatpush1.bf16.msra.mxu0 0
    %68 = vmatprep.subr.bf16.mxu0 0
    %69 = vmatpush1.bf16.msra.mxu0 0
    %70 = vmatprep.subr.bf16.mxu0 0
    %71 = vmatpush1.bf16.msra.mxu0 0
    %72 = vmatprep.subr.bf16.mxu0 0
    %73 = vmatpush1.bf16.msra.mxu0 0
    %74 = vmatprep.subr.bf16.mxu0 0
    %75 = vmatpush1.bf16.msra.mxu0 0
    %76 = vmatprep.subr.bf16.mxu0 0
    %77 = vmatpush1.bf16.msra.mxu0 0
    %78 = vmatprep.subr.bf16.mxu0 0
    %79 = vmatpush1.bf16.msra.mxu0 0
    %80 = vmatprep.subr.bf16.mxu0 0
    %81 = vmatpush1.bf16.msra.mxu0 0
    %82 = vmatprep.subr.bf16.mxu0 0
    %83 = vmatpush1.bf16.msra.mxu0 0
    %84 = vmatprep.subr.bf16.mxu0 0
    %85 = vmatpush1.bf16.msra.mxu0 0
    %86 = vmatprep.subr.bf16.mxu0 0
    %87 = vmatpush1.bf16.msra.mxu0 0
    %88 = vmatprep.subr.bf16.mxu0 0
    %89 = vmatpush1.bf16.msra.mxu0 0
    %90 = vmatprep.subr.bf16.mxu0 0
    %91 = vmatpush1.bf16.msra.mxu0 0
    %92 = vmatprep.subr.bf16.mxu0 0
    %93 = vmatpush1.bf16.msra.mxu0 0
    %94 = vmatprep.mubr.bf16.mxu0 0
    %95 = vmatmul.mubr.bf16.gmra.mrb[0].mxu0 %v60
    %v96 = vpop.f32.mrb[0].mxu0
    %v97 = vadd.f32 %v50, %v96
    %v98 = vpop.f32.mrb[0].mxu0
    %v99 = vpop.f32.mrb[0].mxu0
    %v100 = vpop.f32.mrb[0].mxu0
    %101 = vdwg.mxu0
    %v102 = vmax.f32 %v97, 0.0
    %v103 = vpack.c.bf16 %v102, %v102
    %s104 = scalar_lea.vmem [#allocation4], 64
    %v105 = vld [vmem:[%s104] sm:$0xf]
    %v106 = vld [vmem:[%s104 + $0x4] sm:$0xf]
    %v107 = vld [vmem:[%s104 + $0x8] sm:$0xf]
    %v108 = vld [vmem:[%s104 + $0xc] sm:$0xf]
    %v109 = vld [vmem:[%s104 + $0x10] sm:$0xf]
    %v110 = vld [vmem:[%s104 + $0x14] sm:$0xf]
    %v111 = vld [vmem:[%s104 + $0x18] sm:$0xf]
    %v112 = vld [vmem:[%s104 + $0x1c] sm:$0xf]
    %v113 = vld [vmem:[%s104 + $0x20] sm:$0xf]
    %v114 = vld [vmem:[%s104 + $0x24] sm:$0xf]
    %v115 = vld [vmem:[%s104 + $0x28] sm:$0xf]
    %v116 = vld [vmem:[%s104 + $0x2c] sm:$0xf]
    %v117 = vld [vmem:[%s104 + $0x30] sm:$0xf]
    %v118 = vld [vmem:[%s104 + $0x34] sm:$0xf]
    %v119 = vld [vmem:[%s104 + $0x38] sm:$0xf]
    %v120 = vld [vmem:[%s104 + $0x3c] sm:$0xf]
    %s121 = scalar_lea.vmem %s2, 1
    %v122 = vld [vmem:[%s121] sm:$0x1]
    %v124 = vlaneseq
    %v125 = vshrl.u32 %v124, 7
    %v126 = vsub.s32 0, %v125
    %v127 = vrot.slane %v122, %v126
    %v145 = vunpack.c.l.b16 %v105
    %v146 = vunpack.c.l.b16 %v106
    %v147 = vunpack.c.l.b16 %v107
    %v148 = vunpack.c.l.b16 %v108
    %v149 = vunpack.c.l.b16 %v109
    %v150 = vunpack.c.l.b16 %v110
    %v151 = vunpack.c.l.b16 %v111
    %v152 = vunpack.c.l.b16 %v112
    %v153 = vunpack.c.l.b16 %v113
    %v154 = vunpack.c.l.b16 %v114
    %v155 = vunpack.c.l.b16 %v115
    %v156 = vunpack.c.l.b16 %v116
    %v157 = vunpack.c.l.b16 %v117
    %v158 = vunpack.c.l.b16 %v118
    %v159 = vunpack.c.l.b16 %v119
    %v160 = vunpack.c.l.b16 %v120
    %v161 = vpack.c.b16 %v146, %v145
    %v162 = vpack.c.b16 %v148, %v147
    %v163 = vpack.c.b16 %v150, %v149
    %v164 = vpack.c.b16 %v152, %v151
    %v165 = vpack.c.b16 %v154, %v153
    %v166 = vpack.c.b16 %v156, %v155
    %v167 = vpack.c.b16 %v158, %v157
    %v168 = vpack.c.b16 %v160, %v159
    %177 = vmatprep.subr.bf16.mxu0 0
    %178 = vmatpush1.bf16.msra.mxu0 %v161
    %179 = vmatprep.subr.bf16.mxu0 0
    %180 = vmatpush1.bf16.msra.mxu0 %v162
    %181 = vmatprep.subr.bf16.mxu0 0
    %182 = vmatpush1.bf16.msra.mxu0 %v163
    %183 = vmatprep.subr.bf16.mxu0 0
    %184 = vmatpush1.bf16.msra.mxu0 %v164
    %185 = vmatprep.subr.bf16.mxu0 0
    %186 = vmatpush1.bf16.msra.mxu0 %v165
    %187 = vmatprep.subr.bf16.mxu0 0
    %188 = vmatpush1.bf16.msra.mxu0 %v166
    %189 = vmatprep.subr.bf16.mxu0 0
    %190 = vmatpush1.bf16.msra.mxu0 %v167
    %191 = vmatprep.subr.bf16.mxu0 0
    %192 = vmatpush1.bf16.msra.mxu0 %v168
    %193 = vmatprep.subr.bf16.mxu0 0
    %194 = vmatpush1.bf16.msra.mxu0 0
    %195 = vmatprep.subr.bf16.mxu0 0
    %196 = vmatpush1.bf16.msra.mxu0 0
    %197 = vmatprep.subr.bf16.mxu0 0
    %198 = vmatpush1.bf16.msra.mxu0 0
    %199 = vmatprep.subr.bf16.mxu0 0
    %200 = vmatpush1.bf16.msra.mxu0 0
    %201 = vmatprep.subr.bf16.mxu0 0
    %202 = vmatpush1.bf16.msra.mxu0 0
    %203 = vmatprep.subr.bf16.mxu0 0
    %204 = vmatpush1.bf16.msra.mxu0 0
    %205 = vmatprep.subr.bf16.mxu0 0
    %206 = vmatpush1.bf16.msra.mxu0 0
    %207 = vmatprep.subr.bf16.mxu0 0
    %208 = vmatpush1.bf16.msra.mxu0 0
    %209 = vmatprep.mubr.bf16.mxu0 0
    %210 = vmatmul.mubr.bf16.gmra.mrb[0].mxu0 %v103
    %v211 = vpop.f32.mrb[0].mxu0
    %v212 = vadd.f32 %v127, %v211
    %v213 = vpop.f32.mrb[0].mxu0
    %v214 = vpop.f32.mrb[0].mxu0
    %v215 = vpop.f32.mrb[0].mxu0
    %216 = vdwg.mxu0
    %v217 = vmax.f32 %v212, 0.0
    %v218 = vpack.c.bf16 %v217, %v217
    %s219 = scalar_lea.vmem [#allocation4], 128
    %v220 = vld [vmem:[%s219] sm:$0xf]
    %v221 = vld [vmem:[%s219 + $0x4] sm:$0xf]
    %v222 = vld [vmem:[%s219 + $0x8] sm:$0xf]
    %v223 = vld [vmem:[%s219 + $0xc] sm:$0xf]
    %v224 = vld [vmem:[%s219 + $0x10] sm:$0xf]
    %v225 = vld [vmem:[%s219 + $0x14] sm:$0xf]
    %v226 = vld [vmem:[%s219 + $0x18] sm:$0xf]
    %v227 = vld [vmem:[%s219 + $0x1c] sm:$0xf]
    %v228 = vld [vmem:[%s219 + $0x20] sm:$0xf]
    %v229 = vld [vmem:[%s219 + $0x24] sm:$0xf]
    %v230 = vld [vmem:[%s219 + $0x28] sm:$0xf]
    %v231 = vld [vmem:[%s219 + $0x2c] sm:$0xf]
    %v232 = vld [vmem:[%s219 + $0x30] sm:$0xf]
    %v233 = vld [vmem:[%s219 + $0x34] sm:$0xf]
    %v234 = vld [vmem:[%s219 + $0x38] sm:$0xf]
    %v235 = vld [vmem:[%s219 + $0x3c] sm:$0xf]
    %s236 = scalar_lea.vmem %s2, 2
    %v237 = vld [vmem:[%s236] sm:$0x1]
    %v239 = vlaneseq
    %v240 = vshrl.u32 %v239, 7
    %v241 = vsub.s32 0, %v240
    %v242 = vrot.slane %v237, %v241
    %v260 = vunpack.c.l.b16 %v220
    %v261 = vunpack.c.l.b16 %v221
    %v262 = vunpack.c.l.b16 %v222
    %v263 = vunpack.c.l.b16 %v223
    %v264 = vunpack.c.l.b16 %v224
    %v265 = vunpack.c.l.b16 %v225
    %v266 = vunpack.c.l.b16 %v226
    %v267 = vunpack.c.l.b16 %v227
    %v268 = vunpack.c.l.b16 %v228
    %v269 = vunpack.c.l.b16 %v229
    %v270 = vunpack.c.l.b16 %v230
    %v271 = vunpack.c.l.b16 %v231
    %v272 = vunpack.c.l.b16 %v232
    %v273 = vunpack.c.l.b16 %v233
    %v274 = vunpack.c.l.b16 %v234
    %v275 = vunpack.c.l.b16 %v235
    %v276 = vpack.c.b16 %v261, %v260
    %v277 = vpack.c.b16 %v263, %v262
    %v278 = vpack.c.b16 %v265, %v264
    %v279 = vpack.c.b16 %v267, %v266
    %v280 = vpack.c.b16 %v269, %v268
    %v281 = vpack.c.b16 %v271, %v270
    %v282 = vpack.c.b16 %v273, %v272
    %v283 = vpack.c.b16 %v275, %v274
    %292 = vmatprep.subr.bf16.mxu0 0
    %293 = vmatpush1.bf16.msra.mxu0 %v276
    %294 = vmatprep.subr.bf16.mxu0 0
    %295 = vmatpush1.bf16.msra.mxu0 %v277
    %296 = vmatprep.subr.bf16.mxu0 0
    %297 = vmatpush1.bf16.msra.mxu0 %v278
    %298 = vmatprep.subr.bf16.mxu0 0
    %299 = vmatpush1.bf16.msra.mxu0 %v279
    %300 = vmatprep.subr.bf16.mxu0 0
    %301 = vmatpush1.bf16.msra.mxu0 %v280
    %302 = vmatprep.subr.bf16.mxu0 0
    %303 = vmatpush1.bf16.msra.mxu0 %v281
    %304 = vmatprep.subr.bf16.mxu0 0
    %305 = vmatpush1.bf16.msra.mxu0 %v282
    %306 = vmatprep.subr.bf16.mxu0 0
    %307 = vmatpush1.bf16.msra.mxu0 %v283
    %308 = vmatprep.subr.bf16.mxu0 0
    %309 = vmatpush1.bf16.msra.mxu0 0
    %310 = vmatprep.subr.bf16.mxu0 0
    %311 = vmatpush1.bf16.msra.mxu0 0
    %312 = vmatprep.subr.bf16.mxu0 0
    %313 = vmatpush1.bf16.msra.mxu0 0
    %314 = vmatprep.subr.bf16.mxu0 0
    %315 = vmatpush1.bf16.msra.mxu0 0
    %316 = vmatprep.subr.bf16.mxu0 0
    %317 = vmatpush1.bf16.msra.mxu0 0
    %318 = vmatprep.subr.bf16.mxu0 0
    %319 = vmatpush1.bf16.msra.mxu0 0
    %320 = vmatprep.subr.bf16.mxu0 0
    %321 = vmatpush1.bf16.msra.mxu0 0
    %322 = vmatprep.subr.bf16.mxu0 0
    %323 = vmatpush1.bf16.msra.mxu0 0
    %324 = vmatprep.mubr.bf16.mxu0 0
    %325 = vmatmul.mubr.bf16.gmra.mrb[0].mxu0 %v218
    %v326 = vpop.f32.mrb[0].mxu0
    %v327 = vadd.f32 %v242, %v326
    %v328 = vpop.f32.mrb[0].mxu0
    %v329 = vpop.f32.mrb[0].mxu0
    %v330 = vpop.f32.mrb[0].mxu0
    %331 = vdwg.mxu0
    %v332 = vmax.f32 %v327, 0.0
    %v333 = vpack.c.bf16 %v332, %v332
    %s334 = scalar_lea.vmem [#allocation4], 192
    %v335 = vld [vmem:[%s334] sm:$0xf]
    %v336 = vld [vmem:[%s334 + $0x4] sm:$0xf]
    %v337 = vld [vmem:[%s334 + $0x8] sm:$0xf]
    %v338 = vld [vmem:[%s334 + $0xc] sm:$0xf]
    %v339 = vld [vmem:[%s334 + $0x10] sm:$0xf]
    %v340 = vld [vmem:[%s334 + $0x14] sm:$0xf]
    %v341 = vld [vmem:[%s334 + $0x18] sm:$0xf]
    %v342 = vld [vmem:[%s334 + $0x1c] sm:$0xf]
    %v343 = vld [vmem:[%s334 + $0x20] sm:$0xf]
    %v344 = vld [vmem:[%s334 + $0x24] sm:$0xf]
    %v345 = vld [vmem:[%s334 + $0x28] sm:$0xf]
    %v346 = vld [vmem:[%s334 + $0x2c] sm:$0xf]
    %v347 = vld [vmem:[%s334 + $0x30] sm:$0xf]
    %v348 = vld [vmem:[%s334 + $0x34] sm:$0xf]
    %v349 = vld [vmem:[%s334 + $0x38] sm:$0xf]
    %v350 = vld [vmem:[%s334 + $0x3c] sm:$0xf]
    %s351 = scalar_lea.vmem %s2, 3
    %v352 = vld [vmem:[%s351] sm:$0x1]
    %v354 = vlaneseq
    %v355 = vshrl.u32 %v354, 7
    %v356 = vsub.s32 0, %v355
    %v357 = vrot.slane %v352, %v356
    %v375 = vunpack.c.l.b16 %v335
    %v376 = vunpack.c.l.b16 %v336
    %v377 = vunpack.c.l.b16 %v337
    %v378 = vunpack.c.l.b16 %v338
    %v379 = vunpack.c.l.b16 %v339
    %v380 = vunpack.c.l.b16 %v340
    %v381 = vunpack.c.l.b16 %v341
    %v382 = vunpack.c.l.b16 %v342
    %v383 = vunpack.c.l.b16 %v343
    %v384 = vunpack.c.l.b16 %v344
    %v385 = vunpack.c.l.b16 %v345
    %v386 = vunpack.c.l.b16 %v346
    %v387 = vunpack.c.l.b16 %v347
    %v388 = vunpack.c.l.b16 %v348
    %v389 = vunpack.c.l.b16 %v349
    %v390 = vunpack.c.l.b16 %v350
    %v391 = vpack.c.b16 %v376, %v375
    %v392 = vpack.c.b16 %v378, %v377
    %v393 = vpack.c.b16 %v380, %v379
    %v394 = vpack.c.b16 %v382, %v381
    %v395 = vpack.c.b16 %v384, %v383
    %v396 = vpack.c.b16 %v386, %v385
    %v397 = vpack.c.b16 %v388, %v387
    %v398 = vpack.c.b16 %v390, %v389
    %407 = vmatprep.subr.bf16.mxu0 0
    %408 = vmatpush1.bf16.msra.mxu0 %v391
    %409 = vmatprep.subr.bf16.mxu0 0
    %410 = vmatpush1.bf16.msra.mxu0 %v392
    %411 = vmatprep.subr.bf16.mxu0 0
    %412 = vmatpush1.bf16.msra.mxu0 %v393
    %413 = vmatprep.subr.bf16.mxu0 0
    %414 = vmatpush1.bf16.msra.mxu0 %v394
    %415 = vmatprep.subr.bf16.mxu0 0
    %416 = vmatpush1.bf16.msra.mxu0 %v395
    %417 = vmatprep.subr.bf16.mxu0 0
    %418 = vmatpush1.bf16.msra.mxu0 %v396
    %419 = vmatprep.subr.bf16.mxu0 0
    %420 = vmatpush1.bf16.msra.mxu0 %v397
    %421 = vmatprep.subr.bf16.mxu0 0
    %422 = vmatpush1.bf16.msra.mxu0 %v398
    %423 = vmatprep.subr.bf16.mxu0 0
    %424 = vmatpush1.bf16.msra.mxu0 0
    %425 = vmatprep.subr.bf16.mxu0 0
    %426 = vmatpush1.bf16.msra.mxu0 0
    %427 = vmatprep.subr.bf16.mxu0 0
    %428 = vmatpush1.bf16.msra.mxu0 0
    %429 = vmatprep.subr.bf16.mxu0 0
    %430 = vmatpush1.bf16.msra.mxu0 0
    %431 = vmatprep.subr.bf16.mxu0 0
    %432 = vmatpush1.bf16.msra.mxu0 0
    %433 = vmatprep.subr.bf16.mxu0 0
    %434 = vmatpush1.bf16.msra.mxu0 0
    %435 = vmatprep.subr.bf16.mxu0 0
    %436 = vmatpush1.bf16.msra.mxu0 0
    %437 = vmatprep.subr.bf16.mxu0 0
    %438 = vmatpush1.bf16.msra.mxu0 0
    %439 = vmatprep.mubr.bf16.mxu0 0
    %440 = vmatmul.mubr.bf16.gmra.mrb[0].mxu0 %v333
    %v441 = vpop.f32.mrb[0].mxu0
    %v442 = vadd.f32 %v357, %v441
    %v443 = vpop.f32.mrb[0].mxu0
    %v444 = vpop.f32.mrb[0].mxu0
    %v445 = vpop.f32.mrb[0].mxu0
    %446 = vdwg.mxu0
    %447 = vst [vmem:[%s3] sm:$0xff] %v442
    // Predicated region
    $region22: #{_dueling_dqn_forward.1} parent=1 // pred_check
      _
    $region23: #{_dueling_dqn_forward.1} parent=1 // pred_check_branch
      %449 = sbr.rel (0) target = $region25
    $region24: #{_dueling_dqn_forward.1} parent=1 // pred_region
      _
    $region25: #{_dueling_dqn_forward.1} parent=1 // pred_fallthru
      _
    // Predicated region
    $region26: #{_dueling_dqn_forward.1} parent=1 // pred_check
      _
    $region27: #{_dueling_dqn_forward.1} parent=1 // pred_check_branch
      %451 = sbr.rel (0) target = $region29
    $region28: #{_dueling_dqn_forward.1} parent=1 // pred_region
      _
    $region29: #{_dueling_dqn_forward.1} parent=1 // pred_fallthru
      _
    %452 = vsyncpa [#allocation3], 1
    %453 = vsyncpa [#allocation5], 1

</llo_original>
